<compile_context>
chip_gen: v6e
topology: v6e:2x2x1
jax: 0.10.0
libtpu: 0.0.40
codegen_flags: <defaults>
</compile_context>

<pallas_src>
import jax
import jax.numpy as jnp
from jax.experimental import pallas as pl
from jax.experimental.pallas import tpu as pltpu


# ----------------------------------------------------------------------------
# One-time parameter preparation (hoisted OUT of the per-step path).
# ----------------------------------------------------------------------------
def prepare_params(params, input_size, hidden_size):
    """Build the fused, lane-dense weights once.

    Fused weight (In+H, 4H) column layout:
      [0   :  H]  Cell weight
      [H   : 2H]  gate_i column replicated H times
      [2H  : 3H]  gate_f column replicated H times
      [3H  : 4H]  gate_o column replicated H times
    Rows are split into the x-part and h-part so the kernels never need
    concat([x, h]).  For H=32 the fused width is exactly 128 lanes.
    """
    wg, bg, wc, bc = params
    H = hidden_size
    w_fused = jnp.concatenate([wc, jnp.repeat(wg, H, axis=1)], axis=1)  # (In+H, 4H)
    b_fused = jnp.concatenate([bc, jnp.repeat(bg, H, axis=1)], axis=1)  # (1,   4H)
    w_x = w_fused[:input_size, :]                                       # (In,  4H)
    w_h = w_fused[input_size:, :]                                       # (H,   4H)
    # NOTE: for peak MXU throughput on v6e/v7x, w_x/w_h could be pre-cast to
    # bfloat16 here (keep preferred_element_type=f32 and the f32 epilogue);
    # kept in f32 to match the PyTorch module's numerics.
    return w_x, w_h, b_fused


# ----------------------------------------------------------------------------
# Single-step kernel (exact myLSTMCell.forward).
# ----------------------------------------------------------------------------
def lstm_cell_kernel(x_ref, h_ref, c_ref, wx_ref, wh_ref, b_ref, h_out_ref):
    H = c_ref.shape[1]
    # z = [x | h] @ W_fused + b  -> (B, 4H), one lane-dense MXU tile.
    z = (jnp.dot(x_ref[...], wx_ref[...], preferred_element_type=jnp.float32)
         + jnp.dot(h_ref[...], wh_ref[...], preferred_element_type=jnp.float32)
         + b_ref[...])

    cell = jnp.tanh(z[:, :H])                 # (B, H)
    gates = jax.nn.sigmoid(z[:, H:])          # one sigmoid over the gate slab (B, 3H)
    gate_i = gates[:, 0:H]                    # already broadcast across H lanes
    gate_f = gates[:, H:2 * H]
    gate_o = gates[:, 2 * H:3 * H]

    c_new = gate_i * cell + gate_f * c_ref[...]
    h_out_ref[...] = gate_o * jnp.tanh(c_new)
    # The old c is intentionally NOT written back (module returns it unchanged).


def my_lstm_cell(x, state, prepared):
    """Mirror of myLSTMCell.forward. Returns (h_new, c_old)."""
    h, c = state
    w_x, w_h, b_fused = prepared
    B = x.shape[0]
    H = c.shape[1]

    vmem = pl.BlockSpec(memory_space=pltpu.MemorySpace.VMEM)  # whole array in VMEM
    h_out = pl.pallas_call(
        lstm_cell_kernel,
        out_shape=jax.ShapeDtypeStruct((B, H), jnp.float32),
        in_specs=[vmem] * 6,
        out_specs=vmem,
    )(x, h, c, w_x, w_h, b_fused)

    return h_out, c


# ----------------------------------------------------------------------------
# Time-fused kernel: the module iterated over T steps in ONE pallas_call.
# x@W_x + b is precomputed for all steps outside the recurrent loop;
# only h@W_h + epilogue runs per grid step; h carried in VMEM scratch.
# ----------------------------------------------------------------------------
def lstm_seq_kernel(xz_ref, wh_ref, h0_ref, c0_ref, hs_ref, h_carry):
    H = c0_ref.shape[1]
    t = pl.program_id(0)

    @pl.when(t == 0)
    def _():
        h_carry[...] = h0_ref[...]

    z = xz_ref[...] + jnp.dot(h_carry[...], wh_ref[...],
                              preferred_element_type=jnp.float32)

    cell = jnp.tanh(z[:, :H])
    gates = jax.nn.sigmoid(z[:, H:])
    gate_i = gates[:, 0:H]
    gate_f = gates[:, H:2 * H]
    gate_o = gates[:, 2 * H:3 * H]

    # The module returns the OLD c each step, so iterating it never updates
    # the cell state: every step uses c0.
    c_new = gate_i * cell + gate_f * c0_ref[...]
    h_new = gate_o * jnp.tanh(c_new)

    h_carry[...] = h_new
    hs_ref[...] = h_new


def my_lstm_sequence(xs, state, prepared):
    """Apply myLSTMCell over xs[t] for t=0..T-1 in one fused kernel.

    Returns (hs, (h_T, c0)) where hs[t] is the h produced at step t.
    """
    h0, c0 = state
    w_x, w_h, b_fused = prepared
    T, B, _ = xs.shape
    H = c0.shape[1]

    # Input projection for ALL timesteps as one large matmul (no sequential
    # dependence); also folds the bias, removing it from the per-step path.
    xz = jnp.einsum('tbi,if->tbf', xs, w_x,
                    preferred_element_type=jnp.float32) + b_fused  # (T, B, 4H)

    # VMEM footprint here is only a few KiB — far under the 32 MiB default
    # scoped limit (and v7x's 64 MiB physical VMEM), so no vmem_limit needed.
    hs = pl.pallas_call(
        lstm_seq_kernel,
        out_shape=jax.ShapeDtypeStruct((T, B, H), jnp.float32),
        grid=(T,),
        in_specs=[
            # per-step precomputed projection (leading time dim squeezed)
            pl.BlockSpec((None, B, 4 * H), lambda t: (t, 0, 0)),
            # recurrent weight: constant block index -> DMA'd once, stays resident
            pl.BlockSpec((H, 4 * H), lambda t: (0, 0)),
            pl.BlockSpec((B, H), lambda t: (0, 0)),   # h0
            pl.BlockSpec((B, H), lambda t: (0, 0)),   # c0 (never updated by module)
        ],
        out_specs=pl.BlockSpec((None, B, H), lambda t: (t, 0, 0)),
        scratch_shapes=[pltpu.VMEM((B, H), jnp.float32)],  # h carried across steps
        compiler_params=pltpu.CompilerParams(
            dimension_semantics=("arbitrary",)),           # sequential recurrence
    )(xz, w_h, h0, c0)

    return hs, (hs[-1], c0)


# ----------------------------------------------------------------------------
# Pure-JAX references (mirror the PyTorch module exactly).
# ----------------------------------------------------------------------------
def reference_step(x, state, params):
    h, c = state
    wg, bg, wc, bc = params
    xh = jnp.concatenate([x, h], axis=1)
    gate = xh @ wg + bg
    gi = jax.nn.sigmoid(gate[:, 0:1])
    gf = jax.nn.sigmoid(gate[:, 1:2])
    go = jax.nn.sigmoid(gate[:, 2:3])
    C = jnp.tanh(xh @ wc + bc)
    C = gi * C + gf * c
    h_new = go * jnp.tanh(C)
    return h_new, c


def reference_sequence(xs, state, params):
    h, c = state
    outs = []
    for t in range(xs.shape[0]):
        h, c = reference_step(xs[t], (h, c), params)
        outs.append(h)
    return jnp.stack(outs), (h, c)


if __name__ == "__main__":
    B, INPUT, HIDDEN, T = 2, 4, 32, 8
    key = jax.random.PRNGKey(0)
    kx, kh, kc, kwg, kbg, kwc, kbc, kxs = jax.random.split(key, 8)

    x = jax.random.normal(kx, (B, INPUT), dtype=jnp.float32)
    h = jax.random.normal(kh, (B, HIDDEN), dtype=jnp.float32)
    c = jax.random.normal(kc, (B, HIDDEN), dtype=jnp.float32)
    xs = jax.random.normal(kxs, (T, B, INPUT), dtype=jnp.float32)

    fan_in = INPUT + HIDDEN
    bound = 1.0 / (fan_in ** 0.5)
    # gate: Linear(INPUT+HIDDEN, 3)      -> stored transposed (fan_in, 3)
    wg = jax.random.uniform(kwg, (fan_in, 3), jnp.float32, -bound, bound)
    bg = jax.random.uniform(kbg, (1, 3), jnp.float32, -bound, bound)
    # Cell: Linear(INPUT+HIDDEN, HIDDEN) -> stored transposed (fan_in, HIDDEN)
    wc = jax.random.uniform(kwc, (fan_in, HIDDEN), jnp.float32, -bound, bound)
    bc = jax.random.uniform(kbc, (1, HIDDEN), jnp.float32, -bound, bound)
    params = (wg, bg, wc, bc)

    # One-time parameter fusion (NOT in the per-step path).
    prepared = prepare_params(params, INPUT, HIDDEN)

    # --- single step: exact myLSTMCell.forward ---
    h_out, c_out = my_lstm_cell(x, (h, c), prepared)
    jax.block_until_ready((h_out, c_out))
    h_exp, c_exp = reference_step(x, (h, c), params)
    assert jnp.allclose(h_out, h_exp, atol=1e-5, rtol=1e-5)
    assert jnp.allclose(c_out, c_exp, atol=1e-5, rtol=1e-5)

    # --- time-fused sequence: the module iterated T steps in one pallas_call ---
    hs, (h_last, c_last) = my_lstm_sequence(xs, (h, c), prepared)
    jax.block_until_ready((hs, h_last, c_last))
    hs_exp, (h_last_exp, c_last_exp) = reference_sequence(xs, (h, c), params)
    assert jnp.allclose(hs, hs_exp, atol=1e-4, rtol=1e-4)
    assert jnp.allclose(h_last, h_last_exp, atol=1e-4, rtol=1e-4)
    assert jnp.allclose(c_last, c_last_exp, atol=1e-5, rtol=1e-5)

    print("KERNEL_OK")
</pallas_src>

<mosaic_0001>
module attributes {stable_mosaic.version = 11 : i64} {
  func.func @lstm_cell_kernel(%arg0: memref<2x4xf32, #tpu.memory_space<vmem>>, %arg1: memref<2x32xf32, #tpu.memory_space<vmem>>, %arg2: memref<2x32xf32, #tpu.memory_space<vmem>>, %arg3: memref<4x128xf32, #tpu.memory_space<vmem>>, %arg4: memref<32x128xf32, #tpu.memory_space<vmem>>, %arg5: memref<1x128xf32, #tpu.memory_space<vmem>>, %arg6: memref<2x32xf32, #tpu.memory_space<vmem>>) attributes {dimension_semantics = [], scalar_prefetch = 0 : i64, scratch_operands = 0 : i64, tpu.core_type = #tpu.core_type<tc>} {
    %c0 = arith.constant 0 : index
    %c0_0 = arith.constant 0 : index
    %0 = vector.load %arg0[%c0, %c0_0] : memref<2x4xf32, #tpu.memory_space<vmem>>, vector<2x4xf32>
    %c0_1 = arith.constant 0 : index
    %c0_2 = arith.constant 0 : index
    %1 = vector.load %arg3[%c0_1, %c0_2] : memref<4x128xf32, #tpu.memory_space<vmem>>, vector<4x128xf32>
    %cst = arith.constant dense<0.000000e+00> : vector<2x128xf32>
    %2 = tpu.matmul %0, %1, %cst {dimension_numbers = #tpu.dot_dimension_numbers<[1], [0], [0], [1], [0, 0, 1, 1], [], []>} : vector<2x4xf32>, vector<4x128xf32>, vector<2x128xf32> -> vector<2x128xf32>
    %c0_3 = arith.constant 0 : index
    %c0_4 = arith.constant 0 : index
    %3 = vector.load %arg1[%c0_3, %c0_4] : memref<2x32xf32, #tpu.memory_space<vmem>>, vector<2x32xf32>
    %c0_5 = arith.constant 0 : index
    %c0_6 = arith.constant 0 : index
    %4 = vector.load %arg4[%c0_5, %c0_6] : memref<32x128xf32, #tpu.memory_space<vmem>>, vector<32x128xf32>
    %cst_7 = arith.constant dense<0.000000e+00> : vector<2x128xf32>
    %5 = tpu.matmul %3, %4, %cst_7 {dimension_numbers = #tpu.dot_dimension_numbers<[1], [0], [0], [1], [0, 0, 1, 1], [], []>} : vector<2x32xf32>, vector<32x128xf32>, vector<2x128xf32> -> vector<2x128xf32>
    %6 = arith.addf %2, %5 : vector<2x128xf32>
    %c0_8 = arith.constant 0 : index
    %c0_9 = arith.constant 0 : index
    %7 = vector.load %arg5[%c0_8, %c0_9] : memref<1x128xf32, #tpu.memory_space<vmem>>, vector<1x128xf32>
    %8 = vector.broadcast %7 : vector<1x128xf32> to vector<2x128xf32>
    %9 = arith.addf %6, %8 : vector<2x128xf32>
    %10 = vector.extract_strided_slice %9 {offsets = [0, 0], sizes = [2, 32], strides = [1, 1]} : vector<2x128xf32> to vector<2x32xf32>
    %11 = math.tanh %10 : vector<2x32xf32>
    %12 = vector.extract_strided_slice %9 {offsets = [0, 32], sizes = [2, 96], strides = [1, 1]} : vector<2x128xf32> to vector<2x96xf32>
    %13 = arith.negf %12 : vector<2x96xf32>
    %14 = math.exp %13 : vector<2x96xf32>
    %cst_10 = arith.constant 1.000000e+00 : f32
    %15 = vector.broadcast %cst_10 : f32 to vector<2x96xf32>
    %16 = arith.addf %15, %14 : vector<2x96xf32>
    %17 = arith.divf %15, %16 : vector<2x96xf32>
    %18 = vector.extract_strided_slice %17 {offsets = [0, 0], sizes = [2, 32], strides = [1, 1]} : vector<2x96xf32> to vector<2x32xf32>
    %19 = vector.extract_strided_slice %17 {offsets = [0, 32], sizes = [2, 32], strides = [1, 1]} : vector<2x96xf32> to vector<2x32xf32>
    %20 = vector.extract_strided_slice %17 {offsets = [0, 64], sizes = [2, 32], strides = [1, 1]} : vector<2x96xf32> to vector<2x32xf32>
    %21 = arith.mulf %18, %11 : vector<2x32xf32>
    %c0_11 = arith.constant 0 : index
    %c0_12 = arith.constant 0 : index
    %22 = vector.load %arg2[%c0_11, %c0_12] : memref<2x32xf32, #tpu.memory_space<vmem>>, vector<2x32xf32>
    %23 = arith.mulf %19, %22 : vector<2x32xf32>
    %24 = arith.addf %21, %23 : vector<2x32xf32>
    %25 = math.tanh %24 : vector<2x32xf32>
    %26 = arith.mulf %20, %25 : vector<2x32xf32>
    %c0_13 = arith.constant 0 : index
    %c0_14 = arith.constant 0 : index
    %27 = vector.load %arg6[%c0_13, %c0_14] : memref<2x32xf32, #tpu.memory_space<vmem>>, vector<2x32xf32>
    tpu.vector_store %arg6[%c0_13, %c0_14], %26 {strides = array<i32>} : memref<2x32xf32, #tpu.memory_space<vmem>>, vector<2x32xf32>,
    return
  }
}

</mosaic_0001>

<llo_original>
// kernel: tpu_custom_call.1
$region0: #{tpu_custom_call.1}
  #allocation0 [shape = 'u32[]', space=smem, size = 0x4, offset = 0x4, fixed_abs, tag = 'smem constant byte address 0x4 - core index']
  #allocation1 [shape = 'u32[144,128]{1,0:T(1,128)}', space=vmem, size = 0x12000, scoped, tag = 'internal scratch']
  %s0 = inlined_call_operand.hbm [shape: f32[2,4], index: 0, kind: input, shape index: {}]
  %s1 = inlined_call_operand.hbm [shape: f32[2,32], index: 1, kind: input, shape index: {}]
  %s2 = inlined_call_operand.hbm [shape: f32[2,32], index: 2, kind: input, shape index: {}]
  %s3 = inlined_call_operand.vmem [shape: f32[4,128], index: 3, kind: input, shape index: {}]
  %s4 = inlined_call_operand.hbm [shape: f32[32,128], index: 4, kind: input, shape index: {}]
  %s5 = inlined_call_operand.vmem [shape: f32[1,128], index: 5, kind: input, shape index: {}]
  %s6 = inlined_call_operand.hbm [shape: f32[2,32], index: 6, kind: output, shape index: {}]
  %s7 = sld [smem:[#allocation0]]
  $region50: #{tpu_custom_call.1} parent=0
    _
  %s9 = ssub.s32 1, %s7
  %s10 = scalar_select 0, %s9, %s7
  $region1: #{tpu_custom_call.1} parent=0
    #allocation2 [shape = 'u8[1024]{0}', space=vmem, size = 0x400, scoped, tag = 'input window, operand 0, single buffered']
    #allocation3 [shape = 's32[1]{0}', space=sflag, size = 0x4, scoped, tag = 'scoped memory for tpu_custom_call.1']
    #allocation4 [shape = 's32[1]{0}', space=sflag, size = 0x4, scoped, tag = 'scoped memory for tpu_custom_call.1']
    #allocation5 [shape = 'u8[1024]{0}', space=vmem, size = 0x400, scoped, tag = 'input window, operand 1, single buffered']
    #allocation6 [shape = 's32[1]{0}', space=sflag, size = 0x4, scoped, tag = 'scoped memory for tpu_custom_call.1']
    #allocation7 [shape = 'u8[1024]{0}', space=vmem, size = 0x400, scoped, tag = 'input window, operand 2, single buffered']
    #allocation8 [shape = 'u8[16384]{0}', space=vmem, size = 0x4000, scoped, tag = 'input window, operand 4, single buffered']
    #allocation9 [shape = 's32[1]{0}', space=sflag, size = 0x4, scoped, tag = 'scoped memory for tpu_custom_call.1']
    #allocation10 [shape = 'u8[1024]{0}', space=vmem, size = 0x400, scoped, tag = 'output window, operand 0, single buffered']
    %11 = vsyncpa [#allocation3], 0
    %12 = vsyncpa [#allocation6], 0
    %13 = vsyncpa [#allocation9], 0
    %14 = vsyncpa [#allocation4], 0
    // Predicated region
    $region2: #{tpu_custom_call.1} parent=1 // pred_check
      _
    $region3: #{tpu_custom_call.1} parent=1 // pred_check_branch
      %16 = sbr.rel (0) target = $region5
    $region4: #{tpu_custom_call.1} parent=1 // pred_region
      %s18 = ssub.s32 32, 32
      %19 = vsyncadd [#allocation3], %s18
      %s21 = sshll.u32 [#allocation2], 4
      %s22 = int_to_ptr.vmem [resolvable:$true] %s21
      %24 = dma.hbm_to_vmem [thread:$0]  %s0, 32, %s22, [#allocation3]
    $region5: #{tpu_custom_call.1} parent=1 // pred_fallthru
      _
    // Predicated region
    $region6: #{tpu_custom_call.1} parent=1 // pred_check
      _
    $region7: #{tpu_custom_call.1} parent=1 // pred_check_branch
      %26 = sbr.rel (0) target = $region9
    $region8: #{tpu_custom_call.1} parent=1 // pred_region
      %s28 = ssub.s32 32, 32
      %29 = vsyncadd [#allocation6], %s28
      %s31 = sshll.u32 [#allocation5], 4
      %s32 = int_to_ptr.vmem [resolvable:$true] %s31
      %34 = dma.hbm_to_vmem [thread:$0]  %s1, 32, %s32, [#allocation6]
    $region9: #{tpu_custom_call.1} parent=1 // pred_fallthru
      _
    // Predicated region
    $region10: #{tpu_custom_call.1} parent=1 // pred_check
      _
    $region11: #{tpu_custom_call.1} parent=1 // pred_check_branch
      %36 = sbr.rel (0) target = $region13
    $region12: #{tpu_custom_call.1} parent=1 // pred_region
      %s38 = ssub.s32 32, 32
      %39 = vsyncadd [#allocation6], %s38
      %s41 = sshll.u32 [#allocation7], 4
      %s42 = int_to_ptr.vmem [resolvable:$true] %s41
      %44 = dma.hbm_to_vmem [thread:$0]  %s2, 32, %s42, [#allocation6]
    $region13: #{tpu_custom_call.1} parent=1 // pred_fallthru
      _
    // Predicated region
    $region14: #{tpu_custom_call.1} parent=1 // pred_check
      _
    $region15: #{tpu_custom_call.1} parent=1 // pred_check_branch
      %46 = sbr.rel (0) target = $region17
    $region16: #{tpu_custom_call.1} parent=1 // pred_region
      _
    $region17: #{tpu_custom_call.1} parent=1 // pred_fallthru
      _
    // Predicated region
    $region18: #{tpu_custom_call.1} parent=1 // pred_check
      _
    $region19: #{tpu_custom_call.1} parent=1 // pred_check_branch
      %48 = sbr.rel (0) target = $region21
    $region20: #{tpu_custom_call.1} parent=1 // pred_region
      %s50 = ssub.s32 512, 512
      %51 = vsyncadd [#allocation9], %s50
      %s52 = sshll.u32 [#allocation8], 4
      %s53 = int_to_ptr.vmem [resolvable:$true] %s52
      %58 = dma.hbm_to_vmem [thread:$0]  %s4, 512, %s53, [#allocation9], 128, 128, 8
    $region21: #{tpu_custom_call.1} parent=1 // pred_fallthru
      _
    // Predicated region
    $region22: #{tpu_custom_call.1} parent=1 // pred_check
      _
    $region23: #{tpu_custom_call.1} parent=1 // pred_check_branch
      %60 = sbr.rel (0) target = $region25
    $region24: #{tpu_custom_call.1} parent=1 // pred_region
      _
    $region25: #{tpu_custom_call.1} parent=1 // pred_fallthru
      _
    // Predicated region
    $region26: #{tpu_custom_call.1} parent=1 // pred_check
      _
    $region27: #{tpu_custom_call.1} parent=1 // pred_check_branch
      %62 = sbr.rel (0) target = $region29
    $region28: #{tpu_custom_call.1} parent=1 // pred_region
      %63 = dma.done [#allocation3], 32
    $region29: #{tpu_custom_call.1} parent=1 // pred_fallthru
      _
    // Predicated region
    $region30: #{tpu_custom_call.1} parent=1 // pred_check
      _
    $region31: #{tpu_custom_call.1} parent=1 // pred_check_branch
      %65 = sbr.rel (0) target = $region33
    $region32: #{tpu_custom_call.1} parent=1 // pred_region
      %66 = dma.done [#allocation6], 32
    $region33: #{tpu_custom_call.1} parent=1 // pred_fallthru
      _
    // Predicated region
    $region34: #{tpu_custom_call.1} parent=1 // pred_check
      _
    $region35: #{tpu_custom_call.1} parent=1 // pred_check_branch
      %68 = sbr.rel (0) target = $region37
    $region36: #{tpu_custom_call.1} parent=1 // pred_region
      %69 = dma.done [#allocation6], 32
    $region37: #{tpu_custom_call.1} parent=1 // pred_fallthru
      _
    // Predicated region
    $region38: #{tpu_custom_call.1} parent=1 // pred_check
      _
    $region39: #{tpu_custom_call.1} parent=1 // pred_check_branch
      %71 = sbr.rel (0) target = $region41
    $region40: #{tpu_custom_call.1} parent=1 // pred_region
      %72 = dma.done [#allocation9], 512
    $region41: #{tpu_custom_call.1} parent=1 // pred_fallthru
      _
    %v73 = vld [vmem:[#allocation2] sm:$0x3]
    %v74 = vld [vmem:[%s3] sm:$0xf]
    %v75 = vld [vmem:[#allocation5] sm:$0x3]
    %v76 = vld [vmem:[#allocation8] sm:$0xff]
    %v77 = vld [vmem:[#allocation8 + $0x8] sm:$0xff]
    %v78 = vld [vmem:[#allocation8 + $0x10] sm:$0xff]
    %v79 = vld [vmem:[#allocation8 + $0x18] sm:$0xff]
    %vm80 = vcmask 261120
    %v82 = vsel %vm80, %v75, 0
    %84 = vmatprep.subr.mxu0 0.0
    %85 = vmatpush1.msra.mxu0 0.0
    %86 = vmatprep.subr.mxu0 0.0
    %87 = vmatpush1.msra.mxu0 0.0
    %88 = vmatprep.subr.mxu0 0.0
    %89 = vmatpush1.msra.mxu0 0.0
    %90 = vmatprep.subr.mxu0 0.0
    %91 = vmatpush1.msra.mxu0 0.0
    %92 = vmatprep.subr.mxu0 0.0
    %93 = vmatpush1.msra.mxu0 0.0
    %94 = vmatprep.subr.mxu0 0.0
    %95 = vmatpush1.msra.mxu0 0.0
    %96 = vmatprep.subr.mxu0 0.0
    %97 = vmatpush1.msra.mxu0 0.0
    %98 = vmatprep.subr.mxu0 0.0
    %99 = vmatpush1.msra.mxu0 0.0
    %100 = vmatprep.subr.mxu0 0.0
    %101 = vmatpush1.msra.mxu0 0.0
    %102 = vmatprep.subr.mxu0 0.0
    %103 = vmatpush1.msra.mxu0 0.0
    %104 = vmatprep.subr.mxu0 0.0
    %105 = vmatpush1.msra.mxu0 0.0
    %106 = vmatprep.subr.mxu0 0.0
    %107 = vmatpush1.msra.mxu0 0.0
    %108 = vmatprep.subr.mxu0 0.0
    %109 = vmatpush1.msra.mxu0 %v79
    %110 = vmatprep.subr.mxu0 0.0
    %111 = vmatpush1.msra.mxu0 %v78
    %112 = vmatprep.subr.mxu0 0.0
    %113 = vmatpush1.msra.mxu0 %v77
    %114 = vmatprep.subr.mxu0 0.0
    %115 = vmatpush1.msra.mxu0 %v76
    %116 = vmatprep.subr.mxu0 0.0
    %117 = vmatpush2.msra.mxu0 0.0
    %118 = vmatprep.subr.mxu0 0.0
    %119 = vmatpush2.msra.mxu0 0.0
    %120 = vmatprep.subr.mxu0 0.0
    %121 = vmatpush2.msra.mxu0 0.0
    %122 = vmatprep.subr.mxu0 0.0
    %123 = vmatpush2.msra.mxu0 0.0
    %124 = vmatprep.subr.mxu0 0.0
    %125 = vmatpush2.msra.mxu0 0.0
    %126 = vmatprep.subr.mxu0 0.0
    %127 = vmatpush2.msra.mxu0 0.0
    %128 = vmatprep.subr.mxu0 0.0
    %129 = vmatpush2.msra.mxu0 0.0
    %130 = vmatprep.subr.mxu0 0.0
    %131 = vmatpush2.msra.mxu0 0.0
    %132 = vmatprep.subr.mxu0 0.0
    %133 = vmatpush2.msra.mxu0 0.0
    %134 = vmatprep.subr.mxu0 0.0
    %135 = vmatpush2.msra.mxu0 0.0
    %136 = vmatprep.subr.mxu0 0.0
    %137 = vmatpush2.msra.mxu0 0.0
    %138 = vmatprep.subr.mxu0 0.0
    %139 = vmatpush2.msra.mxu0 0.0
    %140 = vmatprep.subr.mxu0 0.0
    %141 = vmatpush2.msra.mxu0 0.0
    %142 = vmatprep.subr.mxu0 0.0
    %143 = vmatpush2.msra.mxu0 0.0
    %144 = vmatprep.subr.mxu0 0.0
    %145 = vmatpush2.msra.mxu0 0.0
    %146 = vmatprep.subr.mxu0 0.0
    %147 = vmatpush2.msra.mxu0 0.0
    %148 = vmatprep.mubr.f32.mxu0 0.0
    %149 = vmatmul.mubr.f32.gmra.mxu0 %v82
    %v150 = vpop.f32.mrf.mxu0
    %v151 = vadd.f32 0.0, %v150
    %v152 = vpop.f32.mrf.mxu0
    %153 = vdwg.mxu0
    %vm154 = vcmask 31744
    %v156 = vsel %vm154, %v73, 0
    %vm158 = vcmask 1043456
    %v160 = vsel %vm158, %v74, 0
    %162 = vmatprep.subr.mxu0 0.0
    %163 = vmatpush1.msra.mxu0 0.0
    %164 = vmatprep.subr.mxu0 0.0
    %165 = vmatpush1.msra.mxu0 0.0
    %166 = vmatprep.subr.mxu0 0.0
    %167 = vmatpush1.msra.mxu0 0.0
    %168 = vmatprep.subr.mxu0 0.0
    %169 = vmatpush1.msra.mxu0 0.0
    %170 = vmatprep.subr.mxu0 0.0
    %171 = vmatpush1.msra.mxu0 0.0
    %172 = vmatprep.subr.mxu0 0.0
    %173 = vmatpush1.msra.mxu0 0.0
    %174 = vmatprep.subr.mxu0 0.0
    %175 = vmatpush1.msra.mxu0 0.0
    %176 = vmatprep.subr.mxu0 0.0
    %177 = vmatpush1.msra.mxu0 0.0
    %178 = vmatprep.subr.mxu0 0.0
    %179 = vmatpush1.msra.mxu0 0.0
    %180 = vmatprep.subr.mxu0 0.0
    %181 = vmatpush1.msra.mxu0 0.0
    %182 = vmatprep.subr.mxu0 0.0
    %183 = vmatpush1.msra.mxu0 0.0
    %184 = vmatprep.subr.mxu0 0.0
    %185 = vmatpush1.msra.mxu0 0.0
    %186 = vmatprep.subr.mxu0 0.0
    %187 = vmatpush1.msra.mxu0 0.0
    %188 = vmatprep.subr.mxu0 0.0
    %189 = vmatpush1.msra.mxu0 0.0
    %190 = vmatprep.subr.mxu0 0.0
    %191 = vmatpush1.msra.mxu0 0.0
    %192 = vmatprep.subr.mxu0 0.0
    %193 = vmatpush1.msra.mxu0 %v160
    %194 = vmatprep.subr.mxu0 0.0
    %195 = vmatpush2.msra.mxu0 0.0
    %196 = vmatprep.subr.mxu0 0.0
    %197 = vmatpush2.msra.mxu0 0.0
    %198 = vmatprep.subr.mxu0 0.0
    %199 = vmatpush2.msra.mxu0 0.0
    %200 = vmatprep.subr.mxu0 0.0
    %201 = vmatpush2.msra.mxu0 0.0
    %202 = vmatprep.subr.mxu0 0.0
    %203 = vmatpush2.msra.mxu0 0.0
    %204 = vmatprep.subr.mxu0 0.0
    %205 = vmatpush2.msra.mxu0 0.0
    %206 = vmatprep.subr.mxu0 0.0
    %207 = vmatpush2.msra.mxu0 0.0
    %208 = vmatprep.subr.mxu0 0.0
    %209 = vmatpush2.msra.mxu0 0.0
    %210 = vmatprep.subr.mxu0 0.0
    %211 = vmatpush2.msra.mxu0 0.0
    %212 = vmatprep.subr.mxu0 0.0
    %213 = vmatpush2.msra.mxu0 0.0
    %214 = vmatprep.subr.mxu0 0.0
    %215 = vmatpush2.msra.mxu0 0.0
    %216 = vmatprep.subr.mxu0 0.0
    %217 = vmatpush2.msra.mxu0 0.0
    %218 = vmatprep.subr.mxu0 0.0
    %219 = vmatpush2.msra.mxu0 0.0
    %220 = vmatprep.subr.mxu0 0.0
    %221 = vmatpush2.msra.mxu0 0.0
    %222 = vmatprep.subr.mxu0 0.0
    %223 = vmatpush2.msra.mxu0 0.0
    %224 = vmatprep.subr.mxu0 0.0
    %225 = vmatpush2.msra.mxu0 0.0
    %226 = vmatprep.mubr.f32.mxu0 0.0
    %227 = vmatmul.mubr.f32.gmra.mxu0 %v156
    %v228 = vpop.f32.mrf.mxu0
    %v229 = vadd.f32 %v151, %v228
    %v230 = vpop.f32.mrf.mxu0
    %231 = vdwg.mxu0
    %v232 = vld [vmem:[%s5] sm:$0x1]
    %v234 = vlaneseq
    %v235 = vshrl.u32 %v234, 7
    %v236 = vsub.s32 0, %v235
    %v237 = vrot.slane %v232, %v236
    %v239 = vadd.f32 %v229, %v237
    %v240 = vtanh.pop %v239
    %v241 = vxor.u32 %v239, 2147483648
    %v242 = vmul.f32 %v241, 1.442695
    %v243 = vpow.pop %v242
    %v244 = vadd.f32 %v243, 1.0
    %v245 = vrcp.pop %v244
    %v246 = vmul.f32 1.0, %v245
    %248 = vrot.lane.b32.xlu0 %v240, 32
    %v249 = vpop.permute.xlu0 %248
    %v251 = vmul.f32 %v246, %v249
    %v252 = vld [vmem:[#allocation7] sm:$0x3]
    %254 = vrot.lane.b32.xlu0 %v252, 64
    %v255 = vpop.permute.xlu0 %254
    %v257 = vmul.f32 %v246, %v255
    %259 = vrot.lane.b32.xlu0 %v257, 96
    %v260 = vpop.permute.xlu0 %259
    %v262 = vadd.f32 %v251, %v260
    %v263 = vtanh.pop %v262
    %265 = vrot.lane.b32.xlu0 %v263, 64
    %v266 = vpop.permute.xlu0 %265
    %v268 = vmul.f32 %v246, %v266
    %270 = vrot.lane.b32.xlu0 %v268, 32
    %v271 = vpop.permute.xlu0 %270
    %vm273 = vcmask 254976
    %274 = vst.msk [vmem:[#allocation10] sm:$0x3] %vm273, %v271
    // Predicated region
    $region42: #{tpu_custom_call.1} parent=1 // pred_check
      _
    $region43: #{tpu_custom_call.1} parent=1 // pred_check_branch
      %276 = sbr.rel (0) target = $region45
    $region44: #{tpu_custom_call.1} parent=1 // pred_region
      %s278 = ssub.s32 32, 32
      %279 = vsyncadd [#allocation4], %s278
      %s281 = sshll.u32 [#allocation10], 4
      %s282 = int_to_ptr.vmem [resolvable:$true] %s281
      %284 = dma.vmem_to_hbm [thread:$0]  %s282, 32, %s6, [#allocation4]
    $region45: #{tpu_custom_call.1} parent=1 // pred_fallthru
      _
    // Predicated region
    $region46: #{tpu_custom_call.1} parent=1 // pred_check
      _
    $region47: #{tpu_custom_call.1} parent=1 // pred_check_branch
      %286 = sbr.rel (0) target = $region49
    $region48: #{tpu_custom_call.1} parent=1 // pred_region
      %287 = dma.done [#allocation4], 32
    $region49: #{tpu_custom_call.1} parent=1 // pred_fallthru
      _
    %288 = vsyncpa [#allocation3], 1
    %289 = vsyncpa [#allocation6], 1
    %290 = vsyncpa [#allocation9], 1
    %291 = vsyncpa [#allocation4], 1

</llo_original>
